<compile_context>
chip_gen: v7x
topology: tpu7x:2x2x1
jax: 0.10.0
libtpu: 0.0.40
codegen_flags: <defaults>
</compile_context>

<pallas_src>
import jax
import jax.numpy as jnp
from jax.experimental import pallas as pl
from jax.experimental.pallas import tpu as pltpu

_LANES = 128
# Target total double-buffered pipeline footprint for all 4 operands
# (3 inputs + 1 output).  16 MiB amortizes the ~0.35 us fixed per-grid-step
# cost to <10% of step time on v5e/v6e/v7x while staying well inside the
# scoped-VMEM defaults (32 MiB) on every generation.
_TARGET_PIPELINE_BYTES = 16 * 1024 * 1024


def _mse_masked_kernel(pred_ref, target_ref, mask_ref, out_ref):
    # Pure VPU elementwise work on the current VMEM tile.  The mask may arrive
    # in a narrow dtype; the cast rides spare VALU slots (DMA is the only
    # bottleneck here, no VLIW slot is anywhere near saturated).
    d = pred_ref[...] - target_ref[...]
    out_ref[...] = (d * d) * mask_ref[...].astype(out_ref.dtype)


def _choose_block_rows(rows, per_row_bytes):
    """Rows per block so the double-buffered footprint ~= _TARGET_PIPELINE_BYTES.

    Returns either the full row count (a block equal to the full array dims is
    always legal, for any dtype) or a multiple of 32 sublanes (layout-native
    for f32 / bf16 / int8 / fp8), so the chooser never collapses to tiny or
    sub-native-tile blocks.
    """
    tm = _TARGET_PIPELINE_BYTES // max(1, 2 * per_row_bytes)
    tm = (tm // 32) * 32
    if tm <= 0 or tm >= rows:
        # TODO(synk): if a single full-height block still exceeds VMEM (tiny
        # row count with an enormous ragged trailing dim), column tiling with
        # in-kernel lane masking would be needed; not implemented.
        return rows
    return tm


def mse_masked_loss(pred, target, mask):
    """Elementwise (pred - target)^2 * mask computed in a Pallas TPU kernel.

    pred, target: same shape and dtype.  mask: same shape, any numeric/bool
    dtype (cast to pred's dtype inside the kernel, so narrow masks reduce HBM
    traffic).  Returns an array with pred's shape and dtype.
    """
    assert pred.shape == target.shape == mask.shape
    orig_shape = pred.shape
    total = pred.size
    out_dtype = pred.dtype

    if total == 0:
        return jnp.zeros(orig_shape, out_dtype)

    # Present the data as a lane-dense (rows, cols) slab -- a free, layout-only
    # reshape of contiguous row-major data in every branch (no padding).
    if total % _LANES == 0:
        rows, cols = total // _LANES, _LANES          # common NCHW case
    elif pred.ndim >= 1:
        # Ragged total: keep the original trailing dim as the lane axis and
        # collapse the rest.  Blocks whose lane dim equals the full array dim
        # are always legal, so no padded copies and no output slice are needed.
        cols = orig_shape[-1]
        rows = total // cols
    else:
        rows, cols = 1, total                          # 0-d input

    def to_slab(x):
        return x.reshape(rows, cols)

    p2, t2, m2 = to_slab(pred), to_slab(target), to_slab(mask)

    per_row_bytes = cols * (p2.dtype.itemsize + t2.dtype.itemsize
                            + m2.dtype.itemsize + jnp.dtype(out_dtype).itemsize)
    tm = _choose_block_rows(rows, per_row_bytes)
    grid = (pl.cdiv(rows, tm),)        # Pallas masks the ragged last block.
    spec = pl.BlockSpec((tm, cols), lambda i: (i, 0))

    # Explicit scoped-VMEM budget covering 4 operands x 2 buffers x block,
    # with headroom; 32 MiB floor matches the v6e/v7x scoped defaults.
    block_bytes = tm * per_row_bytes
    vmem_limit = int(max(32 << 20, 2 * block_bytes + (4 << 20)))

    out2 = pl.pallas_call(
        _mse_masked_kernel,
        out_shape=jax.ShapeDtypeStruct((rows, cols), out_dtype),
        grid_spec=pltpu.PrefetchScalarGridSpec(
            num_scalar_prefetch=0,
            grid=grid,
            in_specs=[spec, spec, spec],
            out_specs=spec,
        ),
        compiler_params=pltpu.CompilerParams(
            dimension_semantics=("parallel",),
            vmem_limit_bytes=vmem_limit,
        ),
    )(p2, t2, m2)

    return out2.reshape(orig_shape)

    # TODO(synk): if a caller immediately sum/mean-reduces the masked loss, a
    # fused-reduction variant (accumulator scratch + "arbitrary" grid axis)
    # would drop the full-size output store; the module spec returns the
    # elementwise loss, so that variant is intentionally not implemented here.


if __name__ == "__main__":
    key = jax.random.PRNGKey(0)
    k1, k2, k3 = jax.random.split(key, 3)

    # Small NCHW inputs consistent with the module's usage.
    N, C, H, W = 2, 4, 16, 16
    pred = jax.random.normal(k1, (N, C, H, W), dtype=jnp.float32)
    target = jax.random.normal(k2, (N, C, H, W), dtype=jnp.float32)
    mask = (jax.random.uniform(k3, (N, C, H, W)) > 0.5).astype(jnp.float32)

    out = jax.block_until_ready(mse_masked_loss(pred, target, mask))
    ref = jnp.square(pred - target) * mask
    assert out.shape == ref.shape
    assert out.dtype == ref.dtype
    assert jnp.allclose(out, ref, atol=1e-6, rtol=1e-6)

    # Narrow-dtype mask (int8): less HBM traffic; cast happens inside the kernel.
    mask_i8 = mask.astype(jnp.int8)
    out_i8 = jax.block_until_ready(mse_masked_loss(pred, target, mask_i8))
    assert jnp.allclose(out_i8, ref, atol=1e-6, rtol=1e-6)

    # Ragged total (not a multiple of 128): handled with no padded copies.
    rp = jax.random.normal(k1, (2, 3, 5, 7), dtype=jnp.float32)
    rt = jax.random.normal(k2, (2, 3, 5, 7), dtype=jnp.float32)
    rm = (jax.random.uniform(k3, (2, 3, 5, 7)) > 0.5).astype(jnp.float32)
    rout = jax.block_until_ready(mse_masked_loss(rp, rt, rm))
    rref = jnp.square(rp - rt) * rm
    assert jnp.allclose(rout, rref, atol=1e-6, rtol=1e-6)

    print("KERNEL_OK")
</pallas_src>

<mosaic_0001>
module attributes {stable_mosaic.version = 11 : i64} {
  func.func @_mse_masked_kernel(%arg0: i32, %arg1: memref<16x128xf32, #tpu.memory_space<vmem>>, %arg2: memref<16x128xf32, #tpu.memory_space<vmem>>, %arg3: memref<16x128xf32, #tpu.memory_space<vmem>>, %arg4: memref<16x128xf32, #tpu.memory_space<vmem>>) attributes {dimension_semantics = [#tpu.dimension_semantics<parallel>], iteration_bounds = array<i64: 1>, scalar_prefetch = 0 : i64, scratch_operands = 0 : i64, tpu.core_type = #tpu.core_type<tc>, window_params = [{transform_indices = @transform_0, window_bounds = array<i64: 16, 128>}, {transform_indices = @transform_1, window_bounds = array<i64: 16, 128>}, {transform_indices = @transform_2, window_bounds = array<i64: 16, 128>}, {transform_indices = @transform_3, window_bounds = array<i64: 16, 128>}]} {
    %c0 = arith.constant 0 : index
    %c0_0 = arith.constant 0 : index
    %0 = vector.load %arg1[%c0, %c0_0] : memref<16x128xf32, #tpu.memory_space<vmem>>, vector<16x128xf32>
    %c0_1 = arith.constant 0 : index
    %c0_2 = arith.constant 0 : index
    %1 = vector.load %arg2[%c0_1, %c0_2] : memref<16x128xf32, #tpu.memory_space<vmem>>, vector<16x128xf32>
    %2 = arith.subf %0, %1 : vector<16x128xf32>
    %3 = arith.mulf %2, %2 : vector<16x128xf32>
    %c0_3 = arith.constant 0 : index
    %c0_4 = arith.constant 0 : index
    %4 = vector.load %arg3[%c0_3, %c0_4] : memref<16x128xf32, #tpu.memory_space<vmem>>, vector<16x128xf32>
    %5 = arith.mulf %3, %4 : vector<16x128xf32>
    %c0_5 = arith.constant 0 : index
    %c0_6 = arith.constant 0 : index
    %6 = vector.load %arg4[%c0_5, %c0_6] : memref<16x128xf32, #tpu.memory_space<vmem>>, vector<16x128xf32>
    tpu.vector_store %arg4[%c0_5, %c0_6], %5 {strides = array<i32>} : memref<16x128xf32, #tpu.memory_space<vmem>>, vector<16x128xf32>,
    return
  }
  func.func @transform_0(%arg0: i32) -> (i32, i32) {
    %c0_i32 = arith.constant 0 : i32
    %c0_i32_0 = arith.constant 0 : i32
    return %arg0, %c0_i32 : i32, i32
  }
  func.func @transform_1(%arg0: i32) -> (i32, i32) {
    %c0_i32 = arith.constant 0 : i32
    %c0_i32_0 = arith.constant 0 : i32
    return %arg0, %c0_i32 : i32, i32
  }
  func.func @transform_2(%arg0: i32) -> (i32, i32) {
    %c0_i32 = arith.constant 0 : i32
    %c0_i32_0 = arith.constant 0 : i32
    return %arg0, %c0_i32 : i32, i32
  }
  func.func @transform_3(%arg0: i32) -> (i32, i32) {
    %c0_i32 = arith.constant 0 : i32
    %c0_i32_0 = arith.constant 0 : i32
    return %arg0, %c0_i32 : i32, i32
  }
}

</mosaic_0001>

<llo_original>
// kernel: tpu_custom_call.1
$region0: #{tpu_custom_call.1}
  #allocation0 [shape = 'u32[]', space=smem, size = 0x4, offset = 0x4, fixed_abs, tag = 'smem constant byte address 0x4 - core index']
  #allocation1 [shape = 'u32[144,128]{1,0:T(1,128)}', space=vmem, size = 0x12000, scoped, tag = 'internal scratch']
  %s0 = inlined_call_operand.hbm [shape: f32[16,128], index: 0, kind: input, shape index: {}]
  %s1 = inlined_call_operand.hbm [shape: f32[16,128], index: 1, kind: input, shape index: {}]
  %s2 = inlined_call_operand.hbm [shape: f32[16,128], index: 2, kind: input, shape index: {}]
  %s3 = inlined_call_operand.hbm [shape: f32[16,128], index: 3, kind: output, shape index: {}]
  %s4 = sld [smem:[#allocation0]]
  $region34: #{tpu_custom_call.1} parent=0
    _
  %s6 = ssub.s32 1, %s4
  %s7 = scalar_select 0, %s6, %s4
  $region1: #{tpu_custom_call.1} parent=0
    #allocation2 [shape = 'u8[8192]{0}', space=vmem, size = 0x2000, scoped, tag = 'input window, operand 0, single buffered']
    #allocation3 [shape = 's32[1]{0}', space=sflag, size = 0x4, scoped, tag = 'scoped memory for tpu_custom_call.1']
    #allocation4 [shape = 's32[1]{0}', space=sflag, size = 0x4, scoped, tag = 'scoped memory for tpu_custom_call.1']
    #allocation5 [shape = 'u8[8192]{0}', space=vmem, size = 0x2000, scoped, tag = 'input window, operand 1, single buffered']
    #allocation6 [shape = 's32[1]{0}', space=sflag, size = 0x4, scoped, tag = 'scoped memory for tpu_custom_call.1']
    #allocation7 [shape = 'u8[8192]{0}', space=vmem, size = 0x2000, scoped, tag = 'input window, operand 2, single buffered']
    #allocation8 [shape = 'u8[8192]{0}', space=vmem, size = 0x2000, scoped, tag = 'output window, operand 0, single buffered']
    %8 = vsyncpa [#allocation3], 0
    %9 = vsyncpa [#allocation6], 0
    %10 = vsyncpa [#allocation4], 0
    // Predicated region
    $region2: #{tpu_custom_call.1} parent=1 // pred_check
      _
    $region3: #{tpu_custom_call.1} parent=1 // pred_check_branch
      %12 = sbr.rel (0) target = $region5
    $region4: #{tpu_custom_call.1} parent=1 // pred_region
      %s14 = ssub.s32 256, 256
      %15 = vsyncadd [#allocation3], %s14
      %s16 = sshll.u32 [#allocation2], 4
      %s17 = int_to_ptr.vmem [resolvable:$true] %s16
      %22 = dma.hbm_to_vmem [thread:$0]  %s0, 256, %s17, [#allocation3], 128, 128, 8
    $region5: #{tpu_custom_call.1} parent=1 // pred_fallthru
      _
    // Predicated region
    $region6: #{tpu_custom_call.1} parent=1 // pred_check
      _
    $region7: #{tpu_custom_call.1} parent=1 // pred_check_branch
      %24 = sbr.rel (0) target = $region9
    $region8: #{tpu_custom_call.1} parent=1 // pred_region
      %s26 = ssub.s32 256, 256
      %27 = vsyncadd [#allocation6], %s26
      %s28 = sshll.u32 [#allocation5], 4
      %s29 = int_to_ptr.vmem [resolvable:$true] %s28
      %34 = dma.hbm_to_vmem [thread:$0]  %s1, 256, %s29, [#allocation6], 128, 128, 8
    $region9: #{tpu_custom_call.1} parent=1 // pred_fallthru
      _
    // Predicated region
    $region10: #{tpu_custom_call.1} parent=1 // pred_check
      _
    $region11: #{tpu_custom_call.1} parent=1 // pred_check_branch
      %36 = sbr.rel (0) target = $region13
    $region12: #{tpu_custom_call.1} parent=1 // pred_region
      %s38 = ssub.s32 256, 256
      %39 = vsyncadd [#allocation6], %s38
      %s40 = sshll.u32 [#allocation7], 4
      %s41 = int_to_ptr.vmem [resolvable:$true] %s40
      %46 = dma.hbm_to_vmem [thread:$0]  %s2, 256, %s41, [#allocation6], 128, 128, 8
    $region13: #{tpu_custom_call.1} parent=1 // pred_fallthru
      _
    // Predicated region
    $region14: #{tpu_custom_call.1} parent=1 // pred_check
      _
    $region15: #{tpu_custom_call.1} parent=1 // pred_check_branch
      %48 = sbr.rel (0) target = $region17
    $region16: #{tpu_custom_call.1} parent=1 // pred_region
      %49 = dma.done [#allocation3], 256
    $region17: #{tpu_custom_call.1} parent=1 // pred_fallthru
      _
    // Predicated region
    $region18: #{tpu_custom_call.1} parent=1 // pred_check
      _
    $region19: #{tpu_custom_call.1} parent=1 // pred_check_branch
      %51 = sbr.rel (0) target = $region21
    $region20: #{tpu_custom_call.1} parent=1 // pred_region
      %52 = dma.done [#allocation6], 256
    $region21: #{tpu_custom_call.1} parent=1 // pred_fallthru
      _
    // Predicated region
    $region22: #{tpu_custom_call.1} parent=1 // pred_check
      _
    $region23: #{tpu_custom_call.1} parent=1 // pred_check_branch
      %54 = sbr.rel (0) target = $region25
    $region24: #{tpu_custom_call.1} parent=1 // pred_region
      %55 = dma.done [#allocation6], 256
    $region25: #{tpu_custom_call.1} parent=1 // pred_fallthru
      _
    %v56 = vld [vmem:[#allocation2] sm:$0xff]
    %v57 = vld [vmem:[#allocation2 + $0x8] sm:$0xff]
    %v58 = vld [vmem:[#allocation5] sm:$0xff]
    %v59 = vld [vmem:[#allocation5 + $0x8] sm:$0xff]
    %v60 = vsub.f32 %v56, %v58
    %v61 = vsub.f32 %v57, %v59
    %v62 = vmul.f32 %v60, %v60
    %v63 = vmul.f32 %v61, %v61
    %v64 = vld [vmem:[#allocation7] sm:$0xff]
    %v65 = vld [vmem:[#allocation7 + $0x8] sm:$0xff]
    %v66 = vmul.f32 %v62, %v64
    %v67 = vmul.f32 %v63, %v65
    %68 = vst [vmem:[#allocation8] sm:$0xff] %v66
    %69 = vst [vmem:[#allocation8 + $0x8] sm:$0xff] %v67
    // Predicated region
    $region26: #{tpu_custom_call.1} parent=1 // pred_check
      _
    $region27: #{tpu_custom_call.1} parent=1 // pred_check_branch
      %71 = sbr.rel (0) target = $region29
    $region28: #{tpu_custom_call.1} parent=1 // pred_region
      %s73 = ssub.s32 256, 256
      %74 = vsyncadd [#allocation4], %s73
      %s75 = sshll.u32 [#allocation8], 4
      %s76 = int_to_ptr.vmem [resolvable:$true] %s75
      %81 = dma.vmem_to_hbm [thread:$0]  %s76, 256, %s3, [#allocation4], 128, 128, 8
    $region29: #{tpu_custom_call.1} parent=1 // pred_fallthru
      _
    // Predicated region
    $region30: #{tpu_custom_call.1} parent=1 // pred_check
      _
    $region31: #{tpu_custom_call.1} parent=1 // pred_check_branch
      %83 = sbr.rel (0) target = $region33
    $region32: #{tpu_custom_call.1} parent=1 // pred_region
      %84 = dma.done [#allocation4], 256
    $region33: #{tpu_custom_call.1} parent=1 // pred_fallthru
      _
    %85 = vsyncpa [#allocation3], 1
    %86 = vsyncpa [#allocation6], 1
    %87 = vsyncpa [#allocation4], 1

</llo_original>
